<compile_context>
chip_gen: v5e
topology: v5e:2x2
jax: 0.10.0
libtpu: 0.0.40
codegen_flags: <defaults>
</compile_context>

<pallas_src>
import functools
import math

import jax
import jax.numpy as jnp
from jax.experimental import pallas as pl
from jax.experimental.pallas import tpu as pltpu  # noqa: F401  (TPU backend assumed)

# Set to jnp.bfloat16 to use the bf16 MXU fast path on v6e/v7x (f32 accumulate).
# Kept at float32 by default to preserve the PyTorch forward-pass numerics.
MATMUL_DTYPE = jnp.float32


# -----------------------------------------------------------------------------
# Fused Pallas kernel: all FNet blocks + mean-pool + classifier
# -----------------------------------------------------------------------------
def fnet_fused_kernel(x_ref,                    # (B*S, D)
                      mseq_ref,                 # (2*B*S, B*S)  [kron(I,Cs); kron(I,Ss)]
                      cd_ref, sd_ref,           # (D, D) cos / sin feature-DFT
                      pool_ref,                 # (B, B*S) mean-over-seq matrix
                      ln1_g_ref, ln1_b_ref,     # (L, 1, D)
                      w1_ref, b1_ref,           # (L, D, H), (L, 1, H)
                      w2_ref, b2_ref,           # (L, H, D), (L, 1, D)
                      ln2_g_ref, ln2_b_ref,     # (L, 1, D)
                      cls_w_ref, cls_b_ref,     # (D, C), (1, C)
                      o_ref):                   # (B, C)
    eps = 1e-5
    num_layers = w1_ref.shape[0]
    bs = mseq_ref.shape[1]                      # B * S

    def mm(a, b):
        # Matmul with configurable operand dtype, always f32 accumulation.
        return jnp.dot(a.astype(MATMUL_DTYPE), b.astype(MATMUL_DTYPE),
                       preferred_element_type=jnp.float32)

    x = x_ref[...]                              # (BS, D) float32
    mseq = mseq_ref[...]
    cd = cd_ref[...]
    sd = sd_ref[...]

    for l in range(num_layers):                 # static unroll (L = 2)
        # --- Fourier sublayer: Re(fft2(x, norm='ortho')), batch folded via
        #     block-diagonal seq-DFT matrices -------------------------------
        t = mm(mseq, x)                         # (2*BS, D) = [Cs@x ; Ss@x]
        fourier = mm(t[:bs], cd) - mm(t[bs:], sd)   # (BS, D)

        # --- residual + LayerNorm 1 (stats in f32) -------------------------
        h = x + fourier
        mu = jnp.mean(h, axis=-1, keepdims=True)
        var = jnp.mean(jnp.square(h - mu), axis=-1, keepdims=True)
        h1 = (h - mu) * jax.lax.rsqrt(var + eps) * ln1_g_ref[l] + ln1_b_ref[l]

        # --- FeedForward: fc2(relu(fc1(x))) --------------------------------
        a = jnp.maximum(mm(h1, w1_ref[l]) + b1_ref[l], 0.0)
        ffn = mm(a, w2_ref[l]) + b2_ref[l]

        # --- residual + LayerNorm 2 ----------------------------------------
        h2 = h1 + ffn
        mu2 = jnp.mean(h2, axis=-1, keepdims=True)
        var2 = jnp.mean(jnp.square(h2 - mu2), axis=-1, keepdims=True)
        x = (h2 - mu2) * jax.lax.rsqrt(var2 + eps) * ln2_g_ref[l] + ln2_b_ref[l]

    # --- mean over seq (as a matmul) + classifier --------------------------
    pooled = mm(pool_ref[...], x)               # (B, D)
    o_ref[...] = mm(pooled, cls_w_ref[...]) + cls_b_ref[...]


def _fused_cost(B, S, D, H, L, C):
    BS = B * S
    flops_layer = (2 * (2 * BS) * BS * D        # stacked seq-DFT matmul
                   + 2 * (2 * BS * D * D)       # two feature-DFT matmuls
                   + 2 * BS * D * H             # fc1
                   + 2 * BS * H * D             # fc2
                   + 12 * BS * D)               # residuals + layernorms (approx)
    flops = L * flops_layer + 2 * B * BS * D + 2 * B * D * C
    bytes_accessed = 4 * (BS * D
                          + 2 * BS * BS + 2 * D * D + B * BS
                          + L * (2 * D * H + H + 6 * D)
                          + D * C + C + B * C)
    return pl.CostEstimate(flops=int(flops), transcendentals=int(2 * L * BS),
                           bytes_accessed=int(bytes_accessed))


def fnet_fused(x, consts, params):
    """x: (B, S, D) float32 activations (embedding + positional)."""
    B, S, D = x.shape
    BS = B * S
    L, _, H = params["w1"].shape
    C = params["cls_w"].shape[1]

    x_flat = x.reshape(BS, D)

    def full(shape):
        return pl.BlockSpec(shape, lambda: (0,) * len(shape))

    return pl.pallas_call(
        fnet_fused_kernel,
        out_shape=jax.ShapeDtypeStruct((B, C), jnp.float32),
        in_specs=[
            full((BS, D)),            # x
            full((2 * BS, BS)),       # stacked block-diagonal seq DFT
            full((D, D)),             # cos_D
            full((D, D)),             # sin_D
            full((B, BS)),            # mean-pool matrix
            full((L, 1, D)),          # ln1 gamma
            full((L, 1, D)),          # ln1 beta
            full((L, D, H)),          # fc1 W
            full((L, 1, H)),          # fc1 b
            full((L, H, D)),          # fc2 W
            full((L, 1, D)),          # fc2 b
            full((L, 1, D)),          # ln2 gamma
            full((L, 1, D)),          # ln2 beta
            full((D, C)),             # classifier W
            full((1, C)),             # classifier b
        ],
        out_specs=full((B, C)),
        cost_estimate=_fused_cost(B, S, D, H, L, C),
    )(x_flat, consts["mseq"], consts["cd"], consts["sd"], consts["pool"],
      params["ln1_g"], params["ln1_b"], params["w1"], params["b1"],
      params["w2"], params["b2"], params["ln2_g"], params["ln2_b"],
      params["cls_w"], params["cls_b"])


# -----------------------------------------------------------------------------
# Host-side constants (built once, passed into the jitted forward)
# -----------------------------------------------------------------------------
def make_fourier_constants(B, S, D):
    """DFT cos/sin matrices (norm='ortho'), block-diagonal over batch, + pooling."""
    def cos_sin(n):
        k = jnp.arange(n, dtype=jnp.float32)
        ang = 2.0 * math.pi * jnp.outer(k, k) / n
        scale = 1.0 / math.sqrt(n)
        return jnp.cos(ang) * scale, jnp.sin(ang) * scale

    cs, ss = cos_sin(S)
    cd, sd = cos_sin(D)
    eye_b = jnp.eye(B, dtype=jnp.float32)
    mseq = jnp.concatenate([jnp.kron(eye_b, cs), jnp.kron(eye_b, ss)], axis=0)
    pool = jnp.kron(eye_b, jnp.full((1, S), 1.0 / S, jnp.float32))
    return {"mseq": mseq, "cd": cd, "sd": sd, "pool": pool}


# -----------------------------------------------------------------------------
# Parameters + forward
# -----------------------------------------------------------------------------
def init_params(key, vocab_size, d_model, num_layers, num_classes,
                hidden_dim, max_seq_length):
    keys = jax.random.split(key, 8)
    return {
        "embedding": 0.02 * jax.random.normal(
            keys[0], (vocab_size, d_model), jnp.float32),
        "pos_embedding": jax.random.normal(
            keys[1], (1, max_seq_length, d_model), jnp.float32),
        # Per-layer weights stacked on a leading layer axis.
        "ln1_g": jnp.ones((num_layers, 1, d_model), jnp.float32),
        "ln1_b": jnp.zeros((num_layers, 1, d_model), jnp.float32),
        "w1": 0.05 * jax.random.normal(
            keys[2], (num_layers, d_model, hidden_dim), jnp.float32),
        "b1": 0.01 * jax.random.normal(
            keys[3], (num_layers, 1, hidden_dim), jnp.float32),
        "w2": 0.05 * jax.random.normal(
            keys[4], (num_layers, hidden_dim, d_model), jnp.float32),
        "b2": 0.01 * jax.random.normal(
            keys[5], (num_layers, 1, d_model), jnp.float32),
        "ln2_g": jnp.ones((num_layers, 1, d_model), jnp.float32),
        "ln2_b": jnp.zeros((num_layers, 1, d_model), jnp.float32),
        "cls_w": 0.05 * jax.random.normal(
            keys[6], (d_model, num_classes), jnp.float32),
        "cls_b": 0.01 * jax.random.normal(
            keys[7], (1, num_classes), jnp.float32),
    }


@jax.jit
def fnet_forward(params, consts, input_ids):
    B, S = input_ids.shape
    # TODO(synk): the token-id embedding gather stays in plain JAX glue (data-
    # dependent lookup); everything after it runs in the single fused kernel.
    x = jnp.take(params["embedding"], input_ids, axis=0)          # (B, S, D)
    x = x + params["pos_embedding"][:, :S, :]
    return fnet_fused(x.astype(jnp.float32), consts, params)


# Pure-JAX reference (for a numerical sanity check against the fused kernel).
def _layernorm_ref(h, g, b, eps=1e-5):
    mu = jnp.mean(h, axis=-1, keepdims=True)
    var = jnp.mean(jnp.square(h - mu), axis=-1, keepdims=True)
    return (h - mu) * jax.lax.rsqrt(var + eps) * g + b


@jax.jit
def fnet_reference(params, input_ids):
    hp = jax.lax.Precision.HIGHEST
    B, S = input_ids.shape
    x = jnp.take(params["embedding"], input_ids, axis=0)
    x = (x + params["pos_embedding"][:, :S, :]).astype(jnp.float32)
    for l in range(params["w1"].shape[0]):
        fourier = jnp.real(jnp.fft.fft2(x, norm="ortho"))
        x = _layernorm_ref(x + fourier, params["ln1_g"][l], params["ln1_b"][l])
        a = jax.nn.relu(
            jnp.einsum("bsd,dh->bsh", x, params["w1"][l], precision=hp)
            + params["b1"][l])
        ffn = jnp.einsum("bsh,hd->bsd", a, params["w2"][l], precision=hp) \
            + params["b2"][l]
        x = _layernorm_ref(x + ffn, params["ln2_g"][l], params["ln2_b"][l])
    pooled = jnp.mean(x, axis=1)
    return jnp.dot(pooled, params["cls_w"], precision=hp) + params["cls_b"]


# -----------------------------------------------------------------------------
# Main
# -----------------------------------------------------------------------------
if __name__ == "__main__":
    vocab_size = 50
    d_model = 32
    num_layers = 2
    num_classes = 5
    hidden_dim = 64
    max_seq_length = 128

    batch = 2
    seq_len = 8

    key = jax.random.PRNGKey(0)
    pkey, dkey = jax.random.split(key)
    params = init_params(pkey, vocab_size, d_model, num_layers, num_classes,
                         hidden_dim, max_seq_length)
    consts = make_fourier_constants(batch, seq_len, d_model)
    input_ids = jax.random.randint(dkey, (batch, seq_len), 0, vocab_size,
                                   dtype=jnp.int32)

    logits = fnet_forward(params, consts, input_ids)
    jax.block_until_ready(logits)
    assert logits.shape == (batch, num_classes)

    ref = fnet_reference(params, input_ids)
    assert jnp.allclose(logits, ref, rtol=2e-2, atol=2e-3), (logits, ref)

    print("KERNEL_OK")
</pallas_src>

<mosaic_0001>
module attributes {stable_mosaic.version = 11 : i64} {
  func.func @fnet_fused_kernel(%arg0: memref<16x32xf32, #tpu.memory_space<vmem>>, %arg1: memref<32x16xf32, #tpu.memory_space<vmem>>, %arg2: memref<32x32xf32, #tpu.memory_space<vmem>>, %arg3: memref<32x32xf32, #tpu.memory_space<vmem>>, %arg4: memref<2x16xf32, #tpu.memory_space<vmem>>, %arg5: memref<2x1x32xf32, #tpu.memory_space<vmem>>, %arg6: memref<2x1x32xf32, #tpu.memory_space<vmem>>, %arg7: memref<2x32x64xf32, #tpu.memory_space<vmem>>, %arg8: memref<2x1x64xf32, #tpu.memory_space<vmem>>, %arg9: memref<2x64x32xf32, #tpu.memory_space<vmem>>, %arg10: memref<2x1x32xf32, #tpu.memory_space<vmem>>, %arg11: memref<2x1x32xf32, #tpu.memory_space<vmem>>, %arg12: memref<2x1x32xf32, #tpu.memory_space<vmem>>, %arg13: memref<32x5xf32, #tpu.memory_space<vmem>>, %arg14: memref<1x5xf32, #tpu.memory_space<vmem>>, %arg15: memref<2x5xf32, #tpu.memory_space<vmem>>) attributes {dimension_semantics = [], scalar_prefetch = 0 : i64, scratch_operands = 0 : i64, tpu.core_type = #tpu.core_type<tc>} {
    %c0 = arith.constant 0 : index
    %c0_0 = arith.constant 0 : index
    %0 = vector.load %arg0[%c0, %c0_0] : memref<16x32xf32, #tpu.memory_space<vmem>>, vector<16x32xf32>
    %c0_1 = arith.constant 0 : index
    %c0_2 = arith.constant 0 : index
    %1 = vector.load %arg1[%c0_1, %c0_2] : memref<32x16xf32, #tpu.memory_space<vmem>>, vector<32x16xf32>
    %c0_3 = arith.constant 0 : index
    %c0_4 = arith.constant 0 : index
    %2 = vector.load %arg2[%c0_3, %c0_4] : memref<32x32xf32, #tpu.memory_space<vmem>>, vector<32x32xf32>
    %c0_5 = arith.constant 0 : index
    %c0_6 = arith.constant 0 : index
    %3 = vector.load %arg3[%c0_5, %c0_6] : memref<32x32xf32, #tpu.memory_space<vmem>>, vector<32x32xf32>
    %cst = arith.constant dense<0.000000e+00> : vector<32x32xf32>
    %4 = tpu.matmul %1, %0, %cst {dimension_numbers = #tpu.dot_dimension_numbers<[1], [0], [0], [1], [0, 0, 1, 1], [], []>} : vector<32x16xf32>, vector<16x32xf32>, vector<32x32xf32> -> vector<32x32xf32>
    %5 = vector.extract_strided_slice %4 {offsets = [0, 0], sizes = [16, 32], strides = [1, 1]} : vector<32x32xf32> to vector<16x32xf32>
    %cst_7 = arith.constant dense<0.000000e+00> : vector<16x32xf32>
    %6 = tpu.matmul %5, %2, %cst_7 {dimension_numbers = #tpu.dot_dimension_numbers<[1], [0], [0], [1], [0, 0, 1, 1], [], []>} : vector<16x32xf32>, vector<32x32xf32>, vector<16x32xf32> -> vector<16x32xf32>
    %7 = vector.extract_strided_slice %4 {offsets = [16, 0], sizes = [16, 32], strides = [1, 1]} : vector<32x32xf32> to vector<16x32xf32>
    %cst_8 = arith.constant dense<0.000000e+00> : vector<16x32xf32>
    %8 = tpu.matmul %7, %3, %cst_8 {dimension_numbers = #tpu.dot_dimension_numbers<[1], [0], [0], [1], [0, 0, 1, 1], [], []>} : vector<16x32xf32>, vector<32x32xf32>, vector<16x32xf32> -> vector<16x32xf32>
    %9 = arith.subf %6, %8 : vector<16x32xf32>
    %10 = arith.addf %0, %9 : vector<16x32xf32>
    %cst_9 = arith.constant dense<0.000000e+00> : vector<16xf32>
    %11 = vector.multi_reduction <add>, %10, %cst_9 [1] : vector<16x32xf32> to vector<16xf32>
    %12 = vector.shape_cast %11 : vector<16xf32> to vector<16x1xf32>
    %cst_10 = arith.constant 3.200000e+01 : f32
    %13 = vector.broadcast %cst_10 : f32 to vector<16x1xf32>
    %14 = arith.divf %12, %13 : vector<16x1xf32>
    %15 = vector.broadcast %14 : vector<16x1xf32> to vector<16x32xf32>
    %16 = arith.subf %10, %15 : vector<16x32xf32>
    %17 = arith.mulf %16, %16 : vector<16x32xf32>
    %cst_11 = arith.constant dense<0.000000e+00> : vector<16xf32>
    %18 = vector.multi_reduction <add>, %17, %cst_11 [1] : vector<16x32xf32> to vector<16xf32>
    %19 = vector.shape_cast %18 : vector<16xf32> to vector<16x1xf32>
    %cst_12 = arith.constant 3.200000e+01 : f32
    %20 = vector.broadcast %cst_12 : f32 to vector<16x1xf32>
    %21 = arith.divf %19, %20 : vector<16x1xf32>
    %22 = vector.broadcast %14 : vector<16x1xf32> to vector<16x32xf32>
    %23 = arith.subf %10, %22 : vector<16x32xf32>
    %cst_13 = arith.constant 9.99999974E-6 : f32
    %24 = vector.broadcast %cst_13 : f32 to vector<16x1xf32>
    %25 = arith.addf %21, %24 : vector<16x1xf32>
    %26 = math.rsqrt %25 : vector<16x1xf32>
    %27 = vector.broadcast %26 : vector<16x1xf32> to vector<16x32xf32>
    %28 = arith.mulf %23, %27 : vector<16x32xf32>
    %c0_14 = arith.constant 0 : index
    %c0_15 = arith.constant 0 : index
    %c0_16 = arith.constant 0 : index
    %29 = vector.load %arg5[%c0_14, %c0_15, %c0_16] : memref<2x1x32xf32, #tpu.memory_space<vmem>>, vector<1x1x32xf32>
    %30 = vector.shape_cast %29 : vector<1x1x32xf32> to vector<1x32xf32>
    %31 = vector.broadcast %30 : vector<1x32xf32> to vector<16x32xf32>
    %32 = arith.mulf %28, %31 : vector<16x32xf32>
    %c0_17 = arith.constant 0 : index
    %c0_18 = arith.constant 0 : index
    %c0_19 = arith.constant 0 : index
    %33 = vector.load %arg6[%c0_17, %c0_18, %c0_19] : memref<2x1x32xf32, #tpu.memory_space<vmem>>, vector<1x1x32xf32>
    %34 = vector.shape_cast %33 : vector<1x1x32xf32> to vector<1x32xf32>
    %35 = vector.broadcast %34 : vector<1x32xf32> to vector<16x32xf32>
    %36 = arith.addf %32, %35 : vector<16x32xf32>
    %c0_20 = arith.constant 0 : index
    %c0_21 = arith.constant 0 : index
    %c0_22 = arith.constant 0 : index
    %37 = vector.load %arg7[%c0_20, %c0_21, %c0_22] : memref<2x32x64xf32, #tpu.memory_space<vmem>>, vector<1x32x64xf32>
    %38 = vector.shape_cast %37 : vector<1x32x64xf32> to vector<32x64xf32>
    %cst_23 = arith.constant dense<0.000000e+00> : vector<16x64xf32>
    %39 = tpu.matmul %36, %38, %cst_23 {dimension_numbers = #tpu.dot_dimension_numbers<[1], [0], [0], [1], [0, 0, 1, 1], [], []>} : vector<16x32xf32>, vector<32x64xf32>, vector<16x64xf32> -> vector<16x64xf32>
    %c0_24 = arith.constant 0 : index
    %c0_25 = arith.constant 0 : index
    %c0_26 = arith.constant 0 : index
    %40 = vector.load %arg8[%c0_24, %c0_25, %c0_26] : memref<2x1x64xf32, #tpu.memory_space<vmem>>, vector<1x1x64xf32>
    %41 = vector.shape_cast %40 : vector<1x1x64xf32> to vector<1x64xf32>
    %42 = vector.broadcast %41 : vector<1x64xf32> to vector<16x64xf32>
    %43 = arith.addf %39, %42 : vector<16x64xf32>
    %cst_27 = arith.constant 0.000000e+00 : f32
    %44 = vector.broadcast %cst_27 : f32 to vector<16x64xf32>
    %45 = arith.maximumf %43, %44 : vector<16x64xf32>
    %c0_28 = arith.constant 0 : index
    %c0_29 = arith.constant 0 : index
    %c0_30 = arith.constant 0 : index
    %46 = vector.load %arg9[%c0_28, %c0_29, %c0_30] : memref<2x64x32xf32, #tpu.memory_space<vmem>>, vector<1x64x32xf32>
    %47 = vector.shape_cast %46 : vector<1x64x32xf32> to vector<64x32xf32>
    %cst_31 = arith.constant dense<0.000000e+00> : vector<16x32xf32>
    %48 = tpu.matmul %45, %47, %cst_31 {dimension_numbers = #tpu.dot_dimension_numbers<[1], [0], [0], [1], [0, 0, 1, 1], [], []>} : vector<16x64xf32>, vector<64x32xf32>, vector<16x32xf32> -> vector<16x32xf32>
    %c0_32 = arith.constant 0 : index
    %c0_33 = arith.constant 0 : index
    %c0_34 = arith.constant 0 : index
    %49 = vector.load %arg10[%c0_32, %c0_33, %c0_34] : memref<2x1x32xf32, #tpu.memory_space<vmem>>, vector<1x1x32xf32>
    %50 = vector.shape_cast %49 : vector<1x1x32xf32> to vector<1x32xf32>
    %51 = vector.broadcast %50 : vector<1x32xf32> to vector<16x32xf32>
    %52 = arith.addf %48, %51 : vector<16x32xf32>
    %53 = arith.addf %36, %52 : vector<16x32xf32>
    %cst_35 = arith.constant dense<0.000000e+00> : vector<16xf32>
    %54 = vector.multi_reduction <add>, %53, %cst_35 [1] : vector<16x32xf32> to vector<16xf32>
    %55 = vector.shape_cast %54 : vector<16xf32> to vector<16x1xf32>
    %cst_36 = arith.constant 3.200000e+01 : f32
    %56 = vector.broadcast %cst_36 : f32 to vector<16x1xf32>
    %57 = arith.divf %55, %56 : vector<16x1xf32>
    %58 = vector.broadcast %57 : vector<16x1xf32> to vector<16x32xf32>
    %59 = arith.subf %53, %58 : vector<16x32xf32>
    %60 = arith.mulf %59, %59 : vector<16x32xf32>
    %cst_37 = arith.constant dense<0.000000e+00> : vector<16xf32>
    %61 = vector.multi_reduction <add>, %60, %cst_37 [1] : vector<16x32xf32> to vector<16xf32>
    %62 = vector.shape_cast %61 : vector<16xf32> to vector<16x1xf32>
    %cst_38 = arith.constant 3.200000e+01 : f32
    %63 = vector.broadcast %cst_38 : f32 to vector<16x1xf32>
    %64 = arith.divf %62, %63 : vector<16x1xf32>
    %65 = vector.broadcast %57 : vector<16x1xf32> to vector<16x32xf32>
    %66 = arith.subf %53, %65 : vector<16x32xf32>
    %cst_39 = arith.constant 9.99999974E-6 : f32
    %67 = vector.broadcast %cst_39 : f32 to vector<16x1xf32>
    %68 = arith.addf %64, %67 : vector<16x1xf32>
    %69 = math.rsqrt %68 : vector<16x1xf32>
    %70 = vector.broadcast %69 : vector<16x1xf32> to vector<16x32xf32>
    %71 = arith.mulf %66, %70 : vector<16x32xf32>
    %c0_40 = arith.constant 0 : index
    %c0_41 = arith.constant 0 : index
    %c0_42 = arith.constant 0 : index
    %72 = vector.load %arg11[%c0_40, %c0_41, %c0_42] : memref<2x1x32xf32, #tpu.memory_space<vmem>>, vector<1x1x32xf32>
    %73 = vector.shape_cast %72 : vector<1x1x32xf32> to vector<1x32xf32>
    %74 = vector.broadcast %73 : vector<1x32xf32> to vector<16x32xf32>
    %75 = arith.mulf %71, %74 : vector<16x32xf32>
    %c0_43 = arith.constant 0 : index
    %c0_44 = arith.constant 0 : index
    %c0_45 = arith.constant 0 : index
    %76 = vector.load %arg12[%c0_43, %c0_44, %c0_45] : memref<2x1x32xf32, #tpu.memory_space<vmem>>, vector<1x1x32xf32>
    %77 = vector.shape_cast %76 : vector<1x1x32xf32> to vector<1x32xf32>
    %78 = vector.broadcast %77 : vector<1x32xf32> to vector<16x32xf32>
    %79 = arith.addf %75, %78 : vector<16x32xf32>
    %cst_46 = arith.constant dense<0.000000e+00> : vector<32x32xf32>
    %80 = tpu.matmul %1, %79, %cst_46 {dimension_numbers = #tpu.dot_dimension_numbers<[1], [0], [0], [1], [0, 0, 1, 1], [], []>} : vector<32x16xf32>, vector<16x32xf32>, vector<32x32xf32> -> vector<32x32xf32>
    %81 = vector.extract_strided_slice %80 {offsets = [0, 0], sizes = [16, 32], strides = [1, 1]} : vector<32x32xf32> to vector<16x32xf32>
    %cst_47 = arith.constant dense<0.000000e+00> : vector<16x32xf32>
    %82 = tpu.matmul %81, %2, %cst_47 {dimension_numbers = #tpu.dot_dimension_numbers<[1], [0], [0], [1], [0, 0, 1, 1], [], []>} : vector<16x32xf32>, vector<32x32xf32>, vector<16x32xf32> -> vector<16x32xf32>
    %83 = vector.extract_strided_slice %80 {offsets = [16, 0], sizes = [16, 32], strides = [1, 1]} : vector<32x32xf32> to vector<16x32xf32>
    %cst_48 = arith.constant dense<0.000000e+00> : vector<16x32xf32>
    %84 = tpu.matmul %83, %3, %cst_48 {dimension_numbers = #tpu.dot_dimension_numbers<[1], [0], [0], [1], [0, 0, 1, 1], [], []>} : vector<16x32xf32>, vector<32x32xf32>, vector<16x32xf32> -> vector<16x32xf32>
    %85 = arith.subf %82, %84 : vector<16x32xf32>
    %86 = arith.addf %79, %85 : vector<16x32xf32>
    %cst_49 = arith.constant dense<0.000000e+00> : vector<16xf32>
    %87 = vector.multi_reduction <add>, %86, %cst_49 [1] : vector<16x32xf32> to vector<16xf32>
    %88 = vector.shape_cast %87 : vector<16xf32> to vector<16x1xf32>
    %cst_50 = arith.constant 3.200000e+01 : f32
    %89 = vector.broadcast %cst_50 : f32 to vector<16x1xf32>
    %90 = arith.divf %88, %89 : vector<16x1xf32>
    %91 = vector.broadcast %90 : vector<16x1xf32> to vector<16x32xf32>
    %92 = arith.subf %86, %91 : vector<16x32xf32>
    %93 = arith.mulf %92, %92 : vector<16x32xf32>
    %cst_51 = arith.constant dense<0.000000e+00> : vector<16xf32>
    %94 = vector.multi_reduction <add>, %93, %cst_51 [1] : vector<16x32xf32> to vector<16xf32>
    %95 = vector.shape_cast %94 : vector<16xf32> to vector<16x1xf32>
    %cst_52 = arith.constant 3.200000e+01 : f32
    %96 = vector.broadcast %cst_52 : f32 to vector<16x1xf32>
    %97 = arith.divf %95, %96 : vector<16x1xf32>
    %98 = vector.broadcast %90 : vector<16x1xf32> to vector<16x32xf32>
    %99 = arith.subf %86, %98 : vector<16x32xf32>
    %cst_53 = arith.constant 9.99999974E-6 : f32
    %100 = vector.broadcast %cst_53 : f32 to vector<16x1xf32>
    %101 = arith.addf %97, %100 : vector<16x1xf32>
    %102 = math.rsqrt %101 : vector<16x1xf32>
    %103 = vector.broadcast %102 : vector<16x1xf32> to vector<16x32xf32>
    %104 = arith.mulf %99, %103 : vector<16x32xf32>
    %c1 = arith.constant 1 : index
    %c0_54 = arith.constant 0 : index
    %c0_55 = arith.constant 0 : index
    %105 = vector.load %arg5[%c1, %c0_54, %c0_55] : memref<2x1x32xf32, #tpu.memory_space<vmem>>, vector<1x1x32xf32>
    %106 = vector.shape_cast %105 : vector<1x1x32xf32> to vector<1x32xf32>
    %107 = vector.broadcast %106 : vector<1x32xf32> to vector<16x32xf32>
    %108 = arith.mulf %104, %107 : vector<16x32xf32>
    %c1_56 = arith.constant 1 : index
    %c0_57 = arith.constant 0 : index
    %c0_58 = arith.constant 0 : index
    %109 = vector.load %arg6[%c1_56, %c0_57, %c0_58] : memref<2x1x32xf32, #tpu.memory_space<vmem>>, vector<1x1x32xf32>
    %110 = vector.shape_cast %109 : vector<1x1x32xf32> to vector<1x32xf32>
    %111 = vector.broadcast %110 : vector<1x32xf32> to vector<16x32xf32>
    %112 = arith.addf %108, %111 : vector<16x32xf32>
    %c1_59 = arith.constant 1 : index
    %c0_60 = arith.constant 0 : index
    %c0_61 = arith.constant 0 : index
    %113 = vector.load %arg7[%c1_59, %c0_60, %c0_61] : memref<2x32x64xf32, #tpu.memory_space<vmem>>, vector<1x32x64xf32>
    %114 = vector.shape_cast %113 : vector<1x32x64xf32> to vector<32x64xf32>
    %cst_62 = arith.constant dense<0.000000e+00> : vector<16x64xf32>
    %115 = tpu.matmul %112, %114, %cst_62 {dimension_numbers = #tpu.dot_dimension_numbers<[1], [0], [0], [1], [0, 0, 1, 1], [], []>} : vector<16x32xf32>, vector<32x64xf32>, vector<16x64xf32> -> vector<16x64xf32>
    %c1_63 = arith.constant 1 : index
    %c0_64 = arith.constant 0 : index
    %c0_65 = arith.constant 0 : index
    %116 = vector.load %arg8[%c1_63, %c0_64, %c0_65] : memref<2x1x64xf32, #tpu.memory_space<vmem>>, vector<1x1x64xf32>
    %117 = vector.shape_cast %116 : vector<1x1x64xf32> to vector<1x64xf32>
    %118 = vector.broadcast %117 : vector<1x64xf32> to vector<16x64xf32>
    %119 = arith.addf %115, %118 : vector<16x64xf32>
    %cst_66 = arith.constant 0.000000e+00 : f32
    %120 = vector.broadcast %cst_66 : f32 to vector<16x64xf32>
    %121 = arith.maximumf %119, %120 : vector<16x64xf32>
    %c1_67 = arith.constant 1 : index
    %c0_68 = arith.constant 0 : index
    %c0_69 = arith.constant 0 : index
    %122 = vector.load %arg9[%c1_67, %c0_68, %c0_69] : memref<2x64x32xf32, #tpu.memory_space<vmem>>, vector<1x64x32xf32>
    %123 = vector.shape_cast %122 : vector<1x64x32xf32> to vector<64x32xf32>
    %cst_70 = arith.constant dense<0.000000e+00> : vector<16x32xf32>
    %124 = tpu.matmul %121, %123, %cst_70 {dimension_numbers = #tpu.dot_dimension_numbers<[1], [0], [0], [1], [0, 0, 1, 1], [], []>} : vector<16x64xf32>, vector<64x32xf32>, vector<16x32xf32> -> vector<16x32xf32>
    %c1_71 = arith.constant 1 : index
    %c0_72 = arith.constant 0 : index
    %c0_73 = arith.constant 0 : index
    %125 = vector.load %arg10[%c1_71, %c0_72, %c0_73] : memref<2x1x32xf32, #tpu.memory_space<vmem>>, vector<1x1x32xf32>
    %126 = vector.shape_cast %125 : vector<1x1x32xf32> to vector<1x32xf32>
    %127 = vector.broadcast %126 : vector<1x32xf32> to vector<16x32xf32>
    %128 = arith.addf %124, %127 : vector<16x32xf32>
    %129 = arith.addf %112, %128 : vector<16x32xf32>
    %cst_74 = arith.constant dense<0.000000e+00> : vector<16xf32>
    %130 = vector.multi_reduction <add>, %129, %cst_74 [1] : vector<16x32xf32> to vector<16xf32>
    %131 = vector.shape_cast %130 : vector<16xf32> to vector<16x1xf32>
    %cst_75 = arith.constant 3.200000e+01 : f32
    %132 = vector.broadcast %cst_75 : f32 to vector<16x1xf32>
    %133 = arith.divf %131, %132 : vector<16x1xf32>
    %134 = vector.broadcast %133 : vector<16x1xf32> to vector<16x32xf32>
    %135 = arith.subf %129, %134 : vector<16x32xf32>
    %136 = arith.mulf %135, %135 : vector<16x32xf32>
    %cst_76 = arith.constant dense<0.000000e+00> : vector<16xf32>
    %137 = vector.multi_reduction <add>, %136, %cst_76 [1] : vector<16x32xf32> to vector<16xf32>
    %138 = vector.shape_cast %137 : vector<16xf32> to vector<16x1xf32>
    %cst_77 = arith.constant 3.200000e+01 : f32
    %139 = vector.broadcast %cst_77 : f32 to vector<16x1xf32>
    %140 = arith.divf %138, %139 : vector<16x1xf32>
    %141 = vector.broadcast %133 : vector<16x1xf32> to vector<16x32xf32>
    %142 = arith.subf %129, %141 : vector<16x32xf32>
    %cst_78 = arith.constant 9.99999974E-6 : f32
    %143 = vector.broadcast %cst_78 : f32 to vector<16x1xf32>
    %144 = arith.addf %140, %143 : vector<16x1xf32>
    %145 = math.rsqrt %144 : vector<16x1xf32>
    %146 = vector.broadcast %145 : vector<16x1xf32> to vector<16x32xf32>
    %147 = arith.mulf %142, %146 : vector<16x32xf32>
    %c1_79 = arith.constant 1 : index
    %c0_80 = arith.constant 0 : index
    %c0_81 = arith.constant 0 : index
    %148 = vector.load %arg11[%c1_79, %c0_80, %c0_81] : memref<2x1x32xf32, #tpu.memory_space<vmem>>, vector<1x1x32xf32>
    %149 = vector.shape_cast %148 : vector<1x1x32xf32> to vector<1x32xf32>
    %150 = vector.broadcast %149 : vector<1x32xf32> to vector<16x32xf32>
    %151 = arith.mulf %147, %150 : vector<16x32xf32>
    %c1_82 = arith.constant 1 : index
    %c0_83 = arith.constant 0 : index
    %c0_84 = arith.constant 0 : index
    %152 = vector.load %arg12[%c1_82, %c0_83, %c0_84] : memref<2x1x32xf32, #tpu.memory_space<vmem>>, vector<1x1x32xf32>
    %153 = vector.shape_cast %152 : vector<1x1x32xf32> to vector<1x32xf32>
    %154 = vector.broadcast %153 : vector<1x32xf32> to vector<16x32xf32>
    %155 = arith.addf %151, %154 : vector<16x32xf32>
    %c0_85 = arith.constant 0 : index
    %c0_86 = arith.constant 0 : index
    %156 = vector.load %arg4[%c0_85, %c0_86] : memref<2x16xf32, #tpu.memory_space<vmem>>, vector<2x16xf32>
    %cst_87 = arith.constant dense<0.000000e+00> : vector<2x32xf32>
    %157 = tpu.matmul %156, %155, %cst_87 {dimension_numbers = #tpu.dot_dimension_numbers<[1], [0], [0], [1], [0, 0, 1, 1], [], []>} : vector<2x16xf32>, vector<16x32xf32>, vector<2x32xf32> -> vector<2x32xf32>
    %c0_88 = arith.constant 0 : index
    %c0_89 = arith.constant 0 : index
    %158 = vector.load %arg13[%c0_88, %c0_89] : memref<32x5xf32, #tpu.memory_space<vmem>>, vector<32x5xf32>
    %cst_90 = arith.constant dense<0.000000e+00> : vector<2x5xf32>
    %159 = tpu.matmul %157, %158, %cst_90 {dimension_numbers = #tpu.dot_dimension_numbers<[1], [0], [0], [1], [0, 0, 1, 1], [], []>} : vector<2x32xf32>, vector<32x5xf32>, vector<2x5xf32> -> vector<2x5xf32>
    %c0_91 = arith.constant 0 : index
    %c0_92 = arith.constant 0 : index
    %160 = vector.load %arg14[%c0_91, %c0_92] : memref<1x5xf32, #tpu.memory_space<vmem>>, vector<1x5xf32>
    %161 = vector.broadcast %160 : vector<1x5xf32> to vector<2x5xf32>
    %162 = arith.addf %159, %161 : vector<2x5xf32>
    %c0_93 = arith.constant 0 : index
    %c0_94 = arith.constant 0 : index
    %163 = vector.load %arg15[%c0_93, %c0_94] : memref<2x5xf32, #tpu.memory_space<vmem>>, vector<2x5xf32>
    tpu.vector_store %arg15[%c0_93, %c0_94], %162 {strides = array<i32>} : memref<2x5xf32, #tpu.memory_space<vmem>>, vector<2x5xf32>,
    return
  }
}

</mosaic_0001>

<llo_original>
// kernel: fnet_forward.1
$region0: #{fnet_forward.1}
  #allocation0 [shape = 'u32[]', space=smem, size = 0x4, offset = 0x4, fixed_abs, tag = 'smem constant byte address 0x4 - core index']
  #allocation1 [shape = 'u32[72,128]{1,0:T(1,128)}', space=vmem, size = 0x9000, scoped, tag = 'internal scratch']
  %s0 = inlined_call_operand.vmem [shape: f32[16,32], index: 0, kind: input, shape index: {}]
  %s1 = inlined_call_operand.vmem [shape: f32[32,16], index: 1, kind: input, shape index: {}]
  %s2 = inlined_call_operand.vmem [shape: f32[32,32], index: 2, kind: input, shape index: {}]
  %s3 = inlined_call_operand.vmem [shape: f32[32,32], index: 3, kind: input, shape index: {}]
  %s4 = inlined_call_operand.vmem [shape: f32[2,16], index: 4, kind: input, shape index: {}]
  %s5 = inlined_call_operand.vmem [shape: f32[2,1,32], index: 5, kind: input, shape index: {}]
  %s6 = inlined_call_operand.vmem [shape: f32[2,1,32], index: 6, kind: input, shape index: {}]
  %s7 = inlined_call_operand.vmem [shape: f32[2,32,64], index: 7, kind: input, shape index: {}]
  %s8 = inlined_call_operand.vmem [shape: f32[2,1,64], index: 8, kind: input, shape index: {}]
  %s9 = inlined_call_operand.vmem [shape: f32[2,64,32], index: 9, kind: input, shape index: {}]
  %s10 = inlined_call_operand.vmem [shape: f32[2,1,32], index: 10, kind: input, shape index: {}]
  %s11 = inlined_call_operand.vmem [shape: f32[2,1,32], index: 11, kind: input, shape index: {}]
  %s12 = inlined_call_operand.vmem [shape: f32[2,1,32], index: 12, kind: input, shape index: {}]
  %s13 = inlined_call_operand.vmem [shape: f32[32,5], index: 13, kind: input, shape index: {}]
  %s14 = inlined_call_operand.vmem [shape: f32[1,5], index: 14, kind: input, shape index: {}]
  %s15 = inlined_call_operand.hbm [shape: f32[2,5], index: 15, kind: output, shape index: {}]
  %s16 = sld [smem:[#allocation0]]
  $region70: #{fnet_forward.1} parent=0
    _
  %s18 = ssub.s32 1, %s16
  %s19 = scalar_select 0, %s18, %s16
  $region1: #{fnet_forward.1} parent=0
    #allocation2 [shape = 'u8[1024]{0}', space=vmem, size = 0x400, scoped, tag = 'output window, operand 0, single buffered']
    #allocation3 [shape = 's32[1]{0}', space=sflag, size = 0x4, scoped, tag = 'scoped memory for fnet_forward.1']
    %20 = vsyncpa [#allocation3], 0
    // Predicated region
    $region2: #{fnet_forward.1} parent=1 // pred_check
      _
    $region3: #{fnet_forward.1} parent=1 // pred_check_branch
      %22 = sbr.rel (0) target = $region5
    $region4: #{fnet_forward.1} parent=1 // pred_region
      _
    $region5: #{fnet_forward.1} parent=1 // pred_fallthru
      _
    // Predicated region
    $region6: #{fnet_forward.1} parent=1 // pred_check
      _
    $region7: #{fnet_forward.1} parent=1 // pred_check_branch
      %24 = sbr.rel (0) target = $region9
    $region8: #{fnet_forward.1} parent=1 // pred_region
      _
    $region9: #{fnet_forward.1} parent=1 // pred_fallthru
      _
    // Predicated region
    $region10: #{fnet_forward.1} parent=1 // pred_check
      _
    $region11: #{fnet_forward.1} parent=1 // pred_check_branch
      %26 = sbr.rel (0) target = $region13
    $region12: #{fnet_forward.1} parent=1 // pred_region
      _
    $region13: #{fnet_forward.1} parent=1 // pred_fallthru
      _
    // Predicated region
    $region14: #{fnet_forward.1} parent=1 // pred_check
      _
    $region15: #{fnet_forward.1} parent=1 // pred_check_branch
      %28 = sbr.rel (0) target = $region17
    $region16: #{fnet_forward.1} parent=1 // pred_region
      _
    $region17: #{fnet_forward.1} parent=1 // pred_fallthru
      _
    // Predicated region
    $region18: #{fnet_forward.1} parent=1 // pred_check
      _
    $region19: #{fnet_forward.1} parent=1 // pred_check_branch
      %30 = sbr.rel (0) target = $region21
    $region20: #{fnet_forward.1} parent=1 // pred_region
      _
    $region21: #{fnet_forward.1} parent=1 // pred_fallthru
      _
    // Predicated region
    $region22: #{fnet_forward.1} parent=1 // pred_check
      _
    $region23: #{fnet_forward.1} parent=1 // pred_check_branch
      %32 = sbr.rel (0) target = $region25
    $region24: #{fnet_forward.1} parent=1 // pred_region
      _
    $region25: #{fnet_forward.1} parent=1 // pred_fallthru
      _
    // Predicated region
    $region26: #{fnet_forward.1} parent=1 // pred_check
      _
    $region27: #{fnet_forward.1} parent=1 // pred_check_branch
      %34 = sbr.rel (0) target = $region29
    $region28: #{fnet_forward.1} parent=1 // pred_region
      _
    $region29: #{fnet_forward.1} parent=1 // pred_fallthru
      _
    // Predicated region
    $region30: #{fnet_forward.1} parent=1 // pred_check
      _
    $region31: #{fnet_forward.1} parent=1 // pred_check_branch
      %36 = sbr.rel (0) target = $region33
    $region32: #{fnet_forward.1} parent=1 // pred_region
      _
    $region33: #{fnet_forward.1} parent=1 // pred_fallthru
      _
    // Predicated region
    $region34: #{fnet_forward.1} parent=1 // pred_check
      _
    $region35: #{fnet_forward.1} parent=1 // pred_check_branch
      %38 = sbr.rel (0) target = $region37
    $region36: #{fnet_forward.1} parent=1 // pred_region
      _
    $region37: #{fnet_forward.1} parent=1 // pred_fallthru
      _
    // Predicated region
    $region38: #{fnet_forward.1} parent=1 // pred_check
      _
    $region39: #{fnet_forward.1} parent=1 // pred_check_branch
      %40 = sbr.rel (0) target = $region41
    $region40: #{fnet_forward.1} parent=1 // pred_region
      _
    $region41: #{fnet_forward.1} parent=1 // pred_fallthru
      _
    // Predicated region
    $region42: #{fnet_forward.1} parent=1 // pred_check
      _
    $region43: #{fnet_forward.1} parent=1 // pred_check_branch
      %42 = sbr.rel (0) target = $region45
    $region44: #{fnet_forward.1} parent=1 // pred_region
      _
    $region45: #{fnet_forward.1} parent=1 // pred_fallthru
      _
    // Predicated region
    $region46: #{fnet_forward.1} parent=1 // pred_check
      _
    $region47: #{fnet_forward.1} parent=1 // pred_check_branch
      %44 = sbr.rel (0) target = $region49
    $region48: #{fnet_forward.1} parent=1 // pred_region
      _
    $region49: #{fnet_forward.1} parent=1 // pred_fallthru
      _
    // Predicated region
    $region50: #{fnet_forward.1} parent=1 // pred_check
      _
    $region51: #{fnet_forward.1} parent=1 // pred_check_branch
      %46 = sbr.rel (0) target = $region53
    $region52: #{fnet_forward.1} parent=1 // pred_region
      _
    $region53: #{fnet_forward.1} parent=1 // pred_fallthru
      _
    // Predicated region
    $region54: #{fnet_forward.1} parent=1 // pred_check
      _
    $region55: #{fnet_forward.1} parent=1 // pred_check_branch
      %48 = sbr.rel (0) target = $region57
    $region56: #{fnet_forward.1} parent=1 // pred_region
      _
    $region57: #{fnet_forward.1} parent=1 // pred_fallthru
      _
    // Predicated region
    $region58: #{fnet_forward.1} parent=1 // pred_check
      _
    $region59: #{fnet_forward.1} parent=1 // pred_check_branch
      %50 = sbr.rel (0) target = $region61
    $region60: #{fnet_forward.1} parent=1 // pred_region
      _
    $region61: #{fnet_forward.1} parent=1 // pred_fallthru
      _
    %v51 = vld [vmem:[%s0] sm:$0xff]
    %v52 = vld [vmem:[%s0 + $0x8] sm:$0xff]
    %v53 = vld [vmem:[%s1] sm:$0xff]
    %v54 = vld [vmem:[%s1 + $0x8] sm:$0xff]
    %v55 = vld [vmem:[%s1 + $0x10] sm:$0xff]
    %v56 = vld [vmem:[%s1 + $0x18] sm:$0xff]
    %v57 = vld [vmem:[%s2] sm:$0xff]
    %v58 = vld [vmem:[%s2 + $0x8] sm:$0xff]
    %v59 = vld [vmem:[%s2 + $0x10] sm:$0xff]
    %v60 = vld [vmem:[%s2 + $0x18] sm:$0xff]
    %v61 = vld [vmem:[%s3] sm:$0xff]
    %v62 = vld [vmem:[%s3 + $0x8] sm:$0xff]
    %v63 = vld [vmem:[%s3 + $0x10] sm:$0xff]
    %v64 = vld [vmem:[%s3 + $0x18] sm:$0xff]
    %vm65 = vcmask 130048
    %v67 = vsel %vm65, %v53, 0
    %v70 = vsel %vm65, %v54, 0
    %v73 = vsel %vm65, %v55, 0
    %v76 = vsel %vm65, %v56, 0
    %78 = vmatpush.msra.mxu0 0.0
    %79 = vmatpush.msra.mxu0 0.0
    %80 = vmatpush.msra.mxu0 0.0
    %81 = vmatpush.msra.mxu0 0.0
    %82 = vmatpush.msra.mxu0 0.0
    %83 = vmatpush.msra.mxu0 0.0
    %84 = vmatpush.msra.mxu0 0.0
    %85 = vmatpush.msra.mxu0 0.0
    %86 = vmatpush.msra.mxu0 0.0
    %87 = vmatpush.msra.mxu0 0.0
    %88 = vmatpush.msra.mxu0 0.0
    %89 = vmatpush.msra.mxu0 0.0
    %90 = vmatpush.msra.mxu0 0.0
    %91 = vmatpush.msra.mxu0 0.0
    %92 = vmatpush.msra.mxu0 %v52
    %93 = vmatpush.msra.mxu0 %v51
    %94 = vmatmul.f32.gmra.mxu0 %v67
    %v95 = vpop.f32.mrf.mxu0
    %v96 = vadd.f32 0.0, %v95
    %97 = vmatmul.f32.gmra.mxu0 %v70
    %v98 = vpop.f32.mrf.mxu0
    %v99 = vadd.f32 0.0, %v98
    %100 = vmatmul.f32.gmra.mxu0 %v73
    %v101 = vpop.f32.mrf.mxu0
    %v102 = vadd.f32 0.0, %v101
    %103 = vmatmul.f32.gmra.mxu0 %v76
    %v104 = vpop.f32.mrf.mxu0
    %v105 = vadd.f32 0.0, %v104
    %106 = vdwg.mxu0
    %vm107 = vcmask 261120
    %v109 = vsel %vm107, %v96, 0
    %v112 = vsel %vm107, %v99, 0
    %114 = vmatpush.msra.mxu0 0.0
    %115 = vmatpush.msra.mxu0 0.0
    %116 = vmatpush.msra.mxu0 0.0
    %117 = vmatpush.msra.mxu0 0.0
    %118 = vmatpush.msra.mxu0 0.0
    %119 = vmatpush.msra.mxu0 0.0
    %120 = vmatpush.msra.mxu0 0.0
    %121 = vmatpush.msra.mxu0 0.0
    %122 = vmatpush.msra.mxu0 0.0
    %123 = vmatpush.msra.mxu0 0.0
    %124 = vmatpush.msra.mxu0 0.0
    %125 = vmatpush.msra.mxu0 0.0
    %126 = vmatpush.msra.mxu0 %v60
    %127 = vmatpush.msra.mxu0 %v59
    %128 = vmatpush.msra.mxu0 %v58
    %129 = vmatpush.msra.mxu0 %v57
    %130 = vmatmul.f32.gmra.mxu0 %v109
    %v131 = vpop.f32.mrf.mxu0
    %v132 = vadd.f32 0.0, %v131
    %133 = vmatmul.f32.gmra.mxu0 %v112
    %v134 = vpop.f32.mrf.mxu0
    %v135 = vadd.f32 0.0, %v134
    %136 = vdwg.mxu0
    %v138 = vsel %vm107, %v102, 0
    %v141 = vsel %vm107, %v105, 0
    %143 = vmatpush.msra.mxu0 0.0
    %144 = vmatpush.msra.mxu0 0.0
    %145 = vmatpush.msra.mxu0 0.0
    %146 = vmatpush.msra.mxu0 0.0
    %147 = vmatpush.msra.mxu0 0.0
    %148 = vmatpush.msra.mxu0 0.0
    %149 = vmatpush.msra.mxu0 0.0
    %150 = vmatpush.msra.mxu0 0.0
    %151 = vmatpush.msra.mxu0 0.0
    %152 = vmatpush.msra.mxu0 0.0
    %153 = vmatpush.msra.mxu0 0.0
    %154 = vmatpush.msra.mxu0 0.0
    %155 = vmatpush.msra.mxu0 %v64
    %156 = vmatpush.msra.mxu0 %v63
    %157 = vmatpush.msra.mxu0 %v62
    %158 = vmatpush.msra.mxu0 %v61
    %159 = vmatmul.f32.gmra.mxu0 %v138
    %v160 = vpop.f32.mrf.mxu0
    %v161 = vadd.f32 0.0, %v160
    %162 = vmatmul.f32.gmra.mxu0 %v141
    %v163 = vpop.f32.mrf.mxu0
    %v164 = vadd.f32 0.0, %v163
    %165 = vdwg.mxu0
    %v166 = vsub.f32 %v132, %v161
    %v167 = vsub.f32 %v135, %v164
    %v168 = vadd.f32 %v51, %v166
    %v169 = vadd.f32 %v52, %v167
    %v170 = vsel %vm107, %v168, 0.0
    %171 = vadd.xlane.f32.xlu0 %v170
    %v172 = vpop.xlane.xlu0 %171
    %v173 = vsel %vm107, %v169, 0.0
    %174 = vadd.xlane.f32.xlu0 %v173
    %v175 = vpop.xlane.xlu0 %174
    %v176 = vrcp.pop 32.0
    %v177 = vmul.f32 32.0, %v176
    %v178 = vsub.f32 1.0, %v177
    %v179 = vmul.f32 %v176, %v178
    %v180 = vadd.f32 %v176, %v179
    %vm181 = vweird.f32 %v176
    %v182 = vsel %vm181, %v176, %v180
    %v183 = vmul.f32 %v172, %v182
    %v184 = vmul.f32 %v175, %v182
    %v185 = vsub.f32 %v168, %v183
    %v186 = vsub.f32 %v169, %v184
    %v187 = vmul.f32 %v185, %v185
    %v188 = vmul.f32 %v186, %v186
    %v189 = vsel %vm107, %v187, 0.0
    %190 = vadd.xlane.f32.xlu0 %v189
    %v191 = vpop.xlane.xlu0 %190
    %v192 = vsel %vm107, %v188, 0.0
    %193 = vadd.xlane.f32.xlu0 %v192
    %v194 = vpop.xlane.xlu0 %193
    %v195 = vmul.f32 %v191, %v182
    %v196 = vmul.f32 %v194, %v182
    %v197 = vadd.f32 %v195, 1e-05
    %v198 = vadd.f32 %v196, 1e-05
    %v199 = vrsqrt.pop %v197
    %v200 = vmul.f32 %v199, %v197
    %v201 = vmul.f32 %v200, %v199
    %v202 = vmul.f32 0.5, %v201
    %v203 = vsub.f32 1.5, %v202
    %v204 = vmul.f32 %v199, %v203
    %vm205 = vweird.f32 %v197
    %vm206 = vweird.f32 %v199
    %vm207 = vmor %vm205, %vm206
    %v208 = vsel %vm207, %v199, %v204
    %v209 = vrsqrt.pop %v198
    %v210 = vmul.f32 %v209, %v198
    %v211 = vmul.f32 %v210, %v209
    %v212 = vmul.f32 0.5, %v211
    %v213 = vsub.f32 1.5, %v212
    %v214 = vmul.f32 %v209, %v213
    %vm215 = vweird.f32 %v198
    %vm216 = vweird.f32 %v209
    %vm217 = vmor %vm215, %vm216
    %v218 = vsel %vm217, %v209, %v214
    %v219 = vmul.f32 %v185, %v208
    %v220 = vmul.f32 %v186, %v218
    %v221 = vld [vmem:[%s5] sm:$0x1]
    %v223 = vperm.slane %v221, 0
    %v225 = vmul.f32 %v219, %v223
    %v226 = vmul.f32 %v220, %v223
    %v227 = vld [vmem:[%s6] sm:$0x1]
    %v229 = vperm.slane %v227, 0
    %v231 = vadd.f32 %v225, %v229
    %v232 = vadd.f32 %v226, %v229
    %v233 = vld [vmem:[%s7] sm:$0xff]
    %v234 = vld [vmem:[%s7 + $0x8] sm:$0xff]
    %v235 = vld [vmem:[%s7 + $0x10] sm:$0xff]
    %v236 = vld [vmem:[%s7 + $0x18] sm:$0xff]
    %v237 = vld [vmem:[%s8] sm:$0x1]
    %v239 = vperm.slane %v237, 0
    %v242 = vsel %vm107, %v231, 0
    %v245 = vsel %vm107, %v232, 0
    %247 = vmatpush.msra.mxu0 0.0
    %248 = vmatpush.msra.mxu0 0.0
    %249 = vmatpush.msra.mxu0 0.0
    %250 = vmatpush.msra.mxu0 0.0
    %251 = vmatpush.msra.mxu0 0.0
    %252 = vmatpush.msra.mxu0 0.0
    %253 = vmatpush.msra.mxu0 0.0
    %254 = vmatpush.msra.mxu0 0.0
    %255 = vmatpush.msra.mxu0 0.0
    %256 = vmatpush.msra.mxu0 0.0
    %257 = vmatpush.msra.mxu0 0.0
    %258 = vmatpush.msra.mxu0 0.0
    %259 = vmatpush.msra.mxu0 %v236
    %260 = vmatpush.msra.mxu0 %v235
    %261 = vmatpush.msra.mxu0 %v234
    %262 = vmatpush.msra.mxu0 %v233
    %263 = vmatmul.f32.gmra.mxu0 %v242
    %v264 = vpop.f32.mrf.mxu0
    %v265 = vadd.f32 %v239, %v264
    %266 = vmatmul.f32.gmra.mxu0 %v245
    %v267 = vpop.f32.mrf.mxu0
    %v268 = vadd.f32 %v239, %v267
    %269 = vdwg.mxu0
    %v270 = vmax.f32 %v265, 0.0
    %v271 = vmax.f32 %v268, 0.0
    %v272 = vld [vmem:[%s9] sm:$0xff]
    %v273 = vld [vmem:[%s9 + $0x8] sm:$0xff]
    %v274 = vld [vmem:[%s9 + $0x10] sm:$0xff]
    %v275 = vld [vmem:[%s9 + $0x18] sm:$0xff]
    %v276 = vld [vmem:[%s9 + $0x20] sm:$0xff]
    %v277 = vld [vmem:[%s9 + $0x28] sm:$0xff]
    %v278 = vld [vmem:[%s9 + $0x30] sm:$0xff]
    %v279 = vld [vmem:[%s9 + $0x38] sm:$0xff]
    %v280 = vld [vmem:[%s10] sm:$0x1]
    %v282 = vperm.slane %v280, 0
    %vm284 = vcmask 523264
    %v286 = vsel %vm284, %v270, 0
    %v289 = vsel %vm284, %v271, 0
    %291 = vmatpush.msra.mxu0 0.0
    %292 = vmatpush.msra.mxu0 0.0
    %293 = vmatpush.msra.mxu0 0.0
    %294 = vmatpush.msra.mxu0 0.0
    %295 = vmatpush.msra.mxu0 0.0
    %296 = vmatpush.msra.mxu0 0.0
    %297 = vmatpush.msra.mxu0 0.0
    %298 = vmatpush.msra.mxu0 0.0
    %299 = vmatpush.msra.mxu0 %v279
    %300 = vmatpush.msra.mxu0 %v278
    %301 = vmatpush.msra.mxu0 %v277
    %302 = vmatpush.msra.mxu0 %v276
    %303 = vmatpush.msra.mxu0 %v275
    %304 = vmatpush.msra.mxu0 %v274
    %305 = vmatpush.msra.mxu0 %v273
    %306 = vmatpush.msra.mxu0 %v272
    %307 = vmatmul.f32.gmra.mxu0 %v286
    %v308 = vpop.f32.mrf.mxu0
    %v309 = vadd.f32 %v282, %v308
    %310 = vmatmul.f32.gmra.mxu0 %v289
    %v311 = vpop.f32.mrf.mxu0
    %v312 = vadd.f32 %v282, %v311
    %313 = vdwg.mxu0
    %v314 = vadd.f32 %v231, %v309
    %v315 = vadd.f32 %v232, %v312
    %v316 = vsel %vm107, %v314, 0.0
    %317 = vadd.xlane.f32.xlu0 %v316
    %v318 = vpop.xlane.xlu0 %317
    %v319 = vsel %vm107, %v315, 0.0
    %320 = vadd.xlane.f32.xlu0 %v319
    %v321 = vpop.xlane.xlu0 %320
    %v322 = vmul.f32 %v318, %v182
    %v323 = vmul.f32 %v321, %v182
    %v324 = vsub.f32 %v314, %v322
    %v325 = vsub.f32 %v315, %v323
    %v326 = vmul.f32 %v324, %v324
    %v327 = vmul.f32 %v325, %v325
    %v328 = vsel %vm107, %v326, 0.0
    %329 = vadd.xlane.f32.xlu0 %v328
    %v330 = vpop.xlane.xlu0 %329
    %v331 = vsel %vm107, %v327, 0.0
    %332 = vadd.xlane.f32.xlu0 %v331
    %v333 = vpop.xlane.xlu0 %332
    %v334 = vmul.f32 %v330, %v182
    %v335 = vmul.f32 %v333, %v182
    %v336 = vadd.f32 %v334, 1e-05
    %v337 = vadd.f32 %v335, 1e-05
    %v338 = vrsqrt.pop %v336
    %v339 = vmul.f32 %v338, %v336
    %v340 = vmul.f32 %v339, %v338
    %v341 = vmul.f32 0.5, %v340
    %v342 = vsub.f32 1.5, %v341
    %v343 = vmul.f32 %v338, %v342
    %vm344 = vweird.f32 %v336
    %vm345 = vweird.f32 %v338
    %vm346 = vmor %vm344, %vm345
    %v347 = vsel %vm346, %v338, %v343
    %v348 = vrsqrt.pop %v337
    %v349 = vmul.f32 %v348, %v337
    %v350 = vmul.f32 %v349, %v348
    %v351 = vmul.f32 0.5, %v350
    %v352 = vsub.f32 1.5, %v351
    %v353 = vmul.f32 %v348, %v352
    %vm354 = vweird.f32 %v337
    %vm355 = vweird.f32 %v348
    %vm356 = vmor %vm354, %vm355
    %v357 = vsel %vm356, %v348, %v353
    %v358 = vmul.f32 %v324, %v347
    %v359 = vmul.f32 %v325, %v357
    %v360 = vld [vmem:[%s11] sm:$0x1]
    %v362 = vperm.slane %v360, 0
    %v364 = vmul.f32 %v358, %v362
    %v365 = vmul.f32 %v359, %v362
    %v366 = vld [vmem:[%s12] sm:$0x1]
    %v368 = vperm.slane %v366, 0
    %v370 = vadd.f32 %v364, %v368
    %v371 = vadd.f32 %v365, %v368
    %372 = vmatpush.msra.mxu0 0.0
    %373 = vmatpush.msra.mxu0 0.0
    %374 = vmatpush.msra.mxu0 0.0
    %375 = vmatpush.msra.mxu0 0.0
    %376 = vmatpush.msra.mxu0 0.0
    %377 = vmatpush.msra.mxu0 0.0
    %378 = vmatpush.msra.mxu0 0.0
    %379 = vmatpush.msra.mxu0 0.0
    %380 = vmatpush.msra.mxu0 0.0
    %381 = vmatpush.msra.mxu0 0.0
    %382 = vmatpush.msra.mxu0 0.0
    %383 = vmatpush.msra.mxu0 0.0
    %384 = vmatpush.msra.mxu0 0.0
    %385 = vmatpush.msra.mxu0 0.0
    %386 = vmatpush.msra.mxu0 %v371
    %387 = vmatpush.msra.mxu0 %v370
    %388 = vmatmul.f32.gmra.mxu0 %v67
    %v389 = vpop.f32.mrf.mxu0
    %v390 = vadd.f32 0.0, %v389
    %391 = vmatmul.f32.gmra.mxu0 %v70
    %v392 = vpop.f32.mrf.mxu0
    %v393 = vadd.f32 0.0, %v392
    %394 = vmatmul.f32.gmra.mxu0 %v73
    %v395 = vpop.f32.mrf.mxu0
    %v396 = vadd.f32 0.0, %v395
    %397 = vmatmul.f32.gmra.mxu0 %v76
    %v398 = vpop.f32.mrf.mxu0
    %v399 = vadd.f32 0.0, %v398
    %400 = vdwg.mxu0
    %v402 = vsel %vm107, %v390, 0
    %v405 = vsel %vm107, %v393, 0
    %407 = vmatpush.msra.mxu0 0.0
    %408 = vmatpush.msra.mxu0 0.0
    %409 = vmatpush.msra.mxu0 0.0
    %410 = vmatpush.msra.mxu0 0.0
    %411 = vmatpush.msra.mxu0 0.0
    %412 = vmatpush.msra.mxu0 0.0
    %413 = vmatpush.msra.mxu0 0.0
    %414 = vmatpush.msra.mxu0 0.0
    %415 = vmatpush.msra.mxu0 0.0
    %416 = vmatpush.msra.mxu0 0.0
    %417 = vmatpush.msra.mxu0 0.0
    %418 = vmatpush.msra.mxu0 0.0
    %419 = vmatpush.msra.mxu0 %v60
    %420 = vmatpush.msra.mxu0 %v59
    %421 = vmatpush.msra.mxu0 %v58
    %422 = vmatpush.msra.mxu0 %v57
    %423 = vmatmul.f32.gmra.mxu0 %v402
    %v424 = vpop.f32.mrf.mxu0
    %v425 = vadd.f32 0.0, %v424
    %426 = vmatmul.f32.gmra.mxu0 %v405
    %v427 = vpop.f32.mrf.mxu0
    %v428 = vadd.f32 0.0, %v427
    %429 = vdwg.mxu0
    %v431 = vsel %vm107, %v396, 0
    %v434 = vsel %vm107, %v399, 0
    %436 = vmatpush.msra.mxu0 0.0
    %437 = vmatpush.msra.mxu0 0.0
    %438 = vmatpush.msra.mxu0 0.0
    %439 = vmatpush.msra.mxu0 0.0
    %440 = vmatpush.msra.mxu0 0.0
    %441 = vmatpush.msra.mxu0 0.0
    %442 = vmatpush.msra.mxu0 0.0
    %443 = vmatpush.msra.mxu0 0.0
    %444 = vmatpush.msra.mxu0 0.0
    %445 = vmatpush.msra.mxu0 0.0
    %446 = vmatpush.msra.mxu0 0.0
    %447 = vmatpush.msra.mxu0 0.0
    %448 = vmatpush.msra.mxu0 %v64
    %449 = vmatpush.msra.mxu0 %v63
    %450 = vmatpush.msra.mxu0 %v62
    %451 = vmatpush.msra.mxu0 %v61
    %452 = vmatmul.f32.gmra.mxu0 %v431
    %v453 = vpop.f32.mrf.mxu0
    %v454 = vadd.f32 0.0, %v453
    %455 = vmatmul.f32.gmra.mxu0 %v434
    %v456 = vpop.f32.mrf.mxu0
    %v457 = vadd.f32 0.0, %v456
    %458 = vdwg.mxu0
    %v459 = vsub.f32 %v425, %v454
    %v460 = vsub.f32 %v428, %v457
    %v461 = vadd.f32 %v370, %v459
    %v462 = vadd.f32 %v371, %v460
    %v463 = vsel %vm107, %v461, 0.0
    %464 = vadd.xlane.f32.xlu0 %v463
    %v465 = vpop.xlane.xlu0 %464
    %v466 = vsel %vm107, %v462, 0.0
    %467 = vadd.xlane.f32.xlu0 %v466
    %v468 = vpop.xlane.xlu0 %467
    %v469 = vmul.f32 %v465, %v182
    %v470 = vmul.f32 %v468, %v182
    %v471 = vsub.f32 %v461, %v469
    %v472 = vsub.f32 %v462, %v470
    %v473 = vmul.f32 %v471, %v471
    %v474 = vmul.f32 %v472, %v472
    %v475 = vsel %vm107, %v473, 0.0
    %476 = vadd.xlane.f32.xlu0 %v475
    %v477 = vpop.xlane.xlu0 %476
    %v478 = vsel %vm107, %v474, 0.0
    %479 = vadd.xlane.f32.xlu0 %v478
    %v480 = vpop.xlane.xlu0 %479
    %v481 = vmul.f32 %v477, %v182
    %v482 = vmul.f32 %v480, %v182
    %v483 = vadd.f32 %v481, 1e-05
    %v484 = vadd.f32 %v482, 1e-05
    %v485 = vrsqrt.pop %v483
    %v486 = vmul.f32 %v485, %v483
    %v487 = vmul.f32 %v486, %v485
    %v488 = vmul.f32 0.5, %v487
    %v489 = vsub.f32 1.5, %v488
    %v490 = vmul.f32 %v485, %v489
    %vm491 = vweird.f32 %v483
    %vm492 = vweird.f32 %v485
    %vm493 = vmor %vm491, %vm492
    %v494 = vsel %vm493, %v485, %v490
    %v495 = vrsqrt.pop %v484
    %v496 = vmul.f32 %v495, %v484
    %v497 = vmul.f32 %v496, %v495
    %v498 = vmul.f32 0.5, %v497
    %v499 = vsub.f32 1.5, %v498
    %v500 = vmul.f32 %v495, %v499
    %vm501 = vweird.f32 %v484
    %vm502 = vweird.f32 %v495
    %vm503 = vmor %vm501, %vm502
    %v504 = vsel %vm503, %v495, %v500
    %v505 = vmul.f32 %v471, %v494
    %v506 = vmul.f32 %v472, %v504
    %s507 = scalar_lea.vmem %s5, 1
    %v508 = vld [vmem:[%s507] sm:$0x1]
    %v510 = vperm.slane %v508, 0
    %v512 = vmul.f32 %v505, %v510
    %v513 = vmul.f32 %v506, %v510
    %s514 = scalar_lea.vmem %s6, 1
    %v515 = vld [vmem:[%s514] sm:$0x1]
    %v517 = vperm.slane %v515, 0
    %v519 = vadd.f32 %v512, %v517
    %v520 = vadd.f32 %v513, %v517
    %s521 = scalar_lea.vmem %s7, 32
    %v522 = vld [vmem:[%s521] sm:$0xff]
    %v523 = vld [vmem:[%s521 + $0x8] sm:$0xff]
    %v524 = vld [vmem:[%s521 + $0x10] sm:$0xff]
    %v525 = vld [vmem:[%s521 + $0x18] sm:$0xff]
    %s526 = scalar_lea.vmem %s8, 1
    %v527 = vld [vmem:[%s526] sm:$0x1]
    %v529 = vperm.slane %v527, 0
    %v532 = vsel %vm107, %v519, 0
    %v535 = vsel %vm107, %v520, 0
    %537 = vmatpush.msra.mxu0 0.0
    %538 = vmatpush.msra.mxu0 0.0
    %539 = vmatpush.msra.mxu0 0.0
    %540 = vmatpush.msra.mxu0 0.0
    %541 = vmatpush.msra.mxu0 0.0
    %542 = vmatpush.msra.mxu0 0.0
    %543 = vmatpush.msra.mxu0 0.0
    %544 = vmatpush.msra.mxu0 0.0
    %545 = vmatpush.msra.mxu0 0.0
    %546 = vmatpush.msra.mxu0 0.0
    %547 = vmatpush.msra.mxu0 0.0
    %548 = vmatpush.msra.mxu0 0.0
    %549 = vmatpush.msra.mxu0 %v525
    %550 = vmatpush.msra.mxu0 %v524
    %551 = vmatpush.msra.mxu0 %v523
    %552 = vmatpush.msra.mxu0 %v522
    %553 = vmatmul.f32.gmra.mxu0 %v532
    %v554 = vpop.f32.mrf.mxu0
    %v555 = vadd.f32 %v529, %v554
    %556 = vmatmul.f32.gmra.mxu0 %v535
    %v557 = vpop.f32.mrf.mxu0
    %v558 = vadd.f32 %v529, %v557
    %559 = vdwg.mxu0
    %v560 = vmax.f32 %v555, 0.0
    %v561 = vmax.f32 %v558, 0.0
    %s562 = scalar_lea.vmem %s9, 64
    %v563 = vld [vmem:[%s562] sm:$0xff]
    %v564 = vld [vmem:[%s562 + $0x8] sm:$0xff]
    %v565 = vld [vmem:[%s562 + $0x10] sm:$0xff]
    %v566 = vld [vmem:[%s562 + $0x18] sm:$0xff]
    %v567 = vld [vmem:[%s562 + $0x20] sm:$0xff]
    %v568 = vld [vmem:[%s562 + $0x28] sm:$0xff]
    %v569 = vld [vmem:[%s562 + $0x30] sm:$0xff]
    %v570 = vld [vmem:[%s562 + $0x38] sm:$0xff]
    %s571 = scalar_lea.vmem %s10, 1
    %v572 = vld [vmem:[%s571] sm:$0x1]
    %v574 = vperm.slane %v572, 0
    %v577 = vsel %vm284, %v560, 0
    %v580 = vsel %vm284, %v561, 0
    %582 = vmatpush.msra.mxu0 0.0
    %583 = vmatpush.msra.mxu0 0.0
    %584 = vmatpush.msra.mxu0 0.0
    %585 = vmatpush.msra.mxu0 0.0
    %586 = vmatpush.msra.mxu0 0.0
    %587 = vmatpush.msra.mxu0 0.0
    %588 = vmatpush.msra.mxu0 0.0
    %589 = vmatpush.msra.mxu0 0.0
    %590 = vmatpush.msra.mxu0 %v570
    %591 = vmatpush.msra.mxu0 %v569
    %592 = vmatpush.msra.mxu0 %v568
    %593 = vmatpush.msra.mxu0 %v567
    %594 = vmatpush.msra.mxu0 %v566
    %595 = vmatpush.msra.mxu0 %v565
    %596 = vmatpush.msra.mxu0 %v564
    %597 = vmatpush.msra.mxu0 %v563
    %598 = vmatmul.f32.gmra.mxu0 %v577
    %v599 = vpop.f32.mrf.mxu0
    %v600 = vadd.f32 %v574, %v599
    %601 = vmatmul.f32.gmra.mxu0 %v580
    %v602 = vpop.f32.mrf.mxu0
    %v603 = vadd.f32 %v574, %v602
    %604 = vdwg.mxu0
    %v605 = vadd.f32 %v519, %v600
    %v606 = vadd.f32 %v520, %v603
    %v607 = vsel %vm107, %v605, 0.0
    %608 = vadd.xlane.f32.xlu0 %v607
    %v609 = vpop.xlane.xlu0 %608
    %v610 = vsel %vm107, %v606, 0.0
    %611 = vadd.xlane.f32.xlu0 %v610
    %v612 = vpop.xlane.xlu0 %611
    %v613 = vmul.f32 %v609, %v182
    %v614 = vmul.f32 %v612, %v182
    %v615 = vsub.f32 %v605, %v613
    %v616 = vsub.f32 %v606, %v614
    %v617 = vmul.f32 %v615, %v615
    %v618 = vmul.f32 %v616, %v616
    %v619 = vsel %vm107, %v617, 0.0
    %620 = vadd.xlane.f32.xlu0 %v619
    %v621 = vpop.xlane.xlu0 %620
    %v622 = vsel %vm107, %v618, 0.0
    %623 = vadd.xlane.f32.xlu0 %v622
    %v624 = vpop.xlane.xlu0 %623
    %v625 = vmul.f32 %v621, %v182
    %v626 = vmul.f32 %v624, %v182
    %v627 = vadd.f32 %v625, 1e-05
    %v628 = vadd.f32 %v626, 1e-05
    %v629 = vrsqrt.pop %v627
    %v630 = vmul.f32 %v629, %v627
    %v631 = vmul.f32 %v630, %v629
    %v632 = vmul.f32 0.5, %v631
    %v633 = vsub.f32 1.5, %v632
    %v634 = vmul.f32 %v629, %v633
    %vm635 = vweird.f32 %v627
    %vm636 = vweird.f32 %v629
    %vm637 = vmor %vm635, %vm636
    %v638 = vsel %vm637, %v629, %v634
    %v639 = vrsqrt.pop %v628
    %v640 = vmul.f32 %v639, %v628
    %v641 = vmul.f32 %v640, %v639
    %v642 = vmul.f32 0.5, %v641
    %v643 = vsub.f32 1.5, %v642
    %v644 = vmul.f32 %v639, %v643
    %vm645 = vweird.f32 %v628
    %vm646 = vweird.f32 %v639
    %vm647 = vmor %vm645, %vm646
    %v648 = vsel %vm647, %v639, %v644
    %v649 = vmul.f32 %v615, %v638
    %v650 = vmul.f32 %v616, %v648
    %s651 = scalar_lea.vmem %s11, 1
    %v652 = vld [vmem:[%s651] sm:$0x1]
    %v654 = vperm.slane %v652, 0
    %v656 = vmul.f32 %v649, %v654
    %v657 = vmul.f32 %v650, %v654
    %s658 = scalar_lea.vmem %s12, 1
    %v659 = vld [vmem:[%s658] sm:$0x1]
    %v661 = vperm.slane %v659, 0
    %v663 = vadd.f32 %v656, %v661
    %v664 = vadd.f32 %v657, %v661
    %v665 = vld [vmem:[%s4] sm:$0x3]
    %v667 = vsel %vm65, %v665, 0
    %669 = vmatpush.msra.mxu0 0.0
    %670 = vmatpush.msra.mxu0 0.0
    %671 = vmatpush.msra.mxu0 0.0
    %672 = vmatpush.msra.mxu0 0.0
    %673 = vmatpush.msra.mxu0 0.0
    %674 = vmatpush.msra.mxu0 0.0
    %675 = vmatpush.msra.mxu0 0.0
    %676 = vmatpush.msra.mxu0 0.0
    %677 = vmatpush.msra.mxu0 0.0
    %678 = vmatpush.msra.mxu0 0.0
    %679 = vmatpush.msra.mxu0 0.0
    %680 = vmatpush.msra.mxu0 0.0
    %681 = vmatpush.msra.mxu0 0.0
    %682 = vmatpush.msra.mxu0 0.0
    %683 = vmatpush.msra.mxu0 %v664
    %684 = vmatpush.msra.mxu0 %v663
    %685 = vmatmul.f32.gmra.mxu0 %v667
    %v686 = vpop.f32.mrf.mxu0
    %v687 = vadd.f32 0.0, %v686
    %688 = vdwg.mxu0
    %v689 = vld [vmem:[%s13] sm:$0xff]
    %v690 = vld [vmem:[%s13 + $0x8] sm:$0xff]
    %v691 = vld [vmem:[%s13 + $0x10] sm:$0xff]
    %v692 = vld [vmem:[%s13 + $0x18] sm:$0xff]
    %v693 = vld [vmem:[%s14] sm:$0x1]
    %v695 = vperm.slane %v693, 0
    %v698 = vsel %vm107, %v687, 0
    %700 = vmatpush.msra.mxu0 0.0
    %701 = vmatpush.msra.mxu0 0.0
    %702 = vmatpush.msra.mxu0 0.0
    %703 = vmatpush.msra.mxu0 0.0
    %704 = vmatpush.msra.mxu0 0.0
    %705 = vmatpush.msra.mxu0 0.0
    %706 = vmatpush.msra.mxu0 0.0
    %707 = vmatpush.msra.mxu0 0.0
    %708 = vmatpush.msra.mxu0 0.0
    %709 = vmatpush.msra.mxu0 0.0
    %710 = vmatpush.msra.mxu0 0.0
    %711 = vmatpush.msra.mxu0 0.0
    %712 = vmatpush.msra.mxu0 %v692
    %713 = vmatpush.msra.mxu0 %v691
    %714 = vmatpush.msra.mxu0 %v690
    %715 = vmatpush.msra.mxu0 %v689
    %716 = vmatmul.f32.gmra.mxu0 %v698
    %v717 = vpop.f32.mrf.mxu0
    %v718 = vadd.f32 %v695, %v717
    %719 = vdwg.mxu0
    %vm720 = vcmask 33792
    %721 = vst.msk [vmem:[#allocation2] sm:$0x3] %vm720, %v718
    // Predicated region
    $region62: #{fnet_forward.1} parent=1 // pred_check
      _
    $region63: #{fnet_forward.1} parent=1 // pred_check_branch
      %723 = sbr.rel (0) target = $region65
    $region64: #{fnet_forward.1} parent=1 // pred_region
      %725 = vsyncadd [#allocation3], 0
      %s727 = sshll.u32 [#allocation2], 4
      %s728 = int_to_ptr.vmem [resolvable:$true] %s727
      %s729 = sshll.u32 %s15, 4
      %s730 = int_to_ptr.hbm [resolvable:$true] %s729
      %732 = dma.vmem_to_hbm [thread:$0]  %s728, 32, %s730, [#allocation3]
    $region65: #{fnet_forward.1} parent=1 // pred_fallthru
      _
    // Predicated region
    $region66: #{fnet_forward.1} parent=1 // pred_check
      _
    $region67: #{fnet_forward.1} parent=1 // pred_check_branch
      %734 = sbr.rel (0) target = $region69
    $region68: #{fnet_forward.1} parent=1 // pred_region
      %736 = dma.done [#allocation3], 32
    $region69: #{fnet_forward.1} parent=1 // pred_fallthru
      _
    %737 = vsyncpa [#allocation3], 1

</llo_original>
